<compile_context>
chip_gen: v7x
topology: tpu7x:2x2x1
jax: 0.10.0
libtpu: 0.0.40
codegen_flags: <defaults>
</compile_context>

<pallas_src>
import functools
import math

import jax
import jax.numpy as jnp
from jax import lax
from jax.experimental import pallas as pl
from jax.experimental.pallas import tpu as pltpu

_LANES = 128
_ACC_ROWS = 64          # 8 independent vreg accumulation chains (64 = 8 * 8 sublanes)


def _cdiv(a, b):
    return -(-a // b)


def _default_n_chunks():
    """2 parallel chunks only where one Pallas kernel spans 2 TensorCores."""
    try:
        kind = jax.devices()[0].device_kind.lower()
    except Exception:
        return 1
    if any(tag in kind for tag in ("v4", "v5p", "7")):  # megacore / v7x
        return 2
    return 1  # v2/v3/v5e/v6e: one TensorCore per chip -> chunking is pure overhead


def _l1log_single_kernel(pred_ref, targ_ref, out_ref, *, alpha, full_rows, rem):
    """Whole problem in one block; emit a lane-dense (1, 128) partial-sum row."""
    p = pred_ref[...].astype(jnp.float32)
    t = targ_ref[...].astype(jnp.float32)
    contrib = jnp.log(jnp.abs(p - t) + alpha)
    if rem:  # padded lanes in the last row must not contribute
        row = lax.broadcasted_iota(jnp.int32, contrib.shape, 0)
        lane = lax.broadcasted_iota(jnp.int32, contrib.shape, 1)
        valid = (row < full_rows) | ((row == full_rows) & (lane < rem))
        contrib = jnp.where(valid, contrib, 0.0)
    out_ref[...] = jnp.sum(contrib, axis=0, keepdims=True)


def _l1log_tiled_kernel(pred_ref, targ_ref, part_ref, *, alpha, block_rows,
                        inner_tiles, full_rows, rem, mask_from, any_mask):
    """(parallel chunks) x (arbitrary reduction) grid.

    Each chunk accumulates into its resident lane-dense (1, 64, 128) output
    block with pure VPU vreg adds; the tiny final reduce happens in the
    wrapper.  Tiles past `mask_from` (partial last tile and clamped duplicate
    grid steps) take a masked branch; all other tiles pay no mask cost.
    """
    ci = pl.program_id(0)  # "parallel" chunk axis (megacore / v7x shardable)
    ti = pl.program_id(1)  # "arbitrary" reduction axis within the chunk

    @pl.when(ti == 0)
    def _():
        part_ref[...] = jnp.zeros_like(part_ref)

    p = pred_ref[...].astype(jnp.float32)
    t = targ_ref[...].astype(jnp.float32)
    contrib = jnp.log(jnp.abs(p - t) + alpha)

    def fold(x):
        # Layout-preserving split of the sublane axis -> 8 independent
        # (ACC_ROWS, 128) vreg chains, summed with pure VPU adds (no XLU).
        return x.reshape(block_rows // _ACC_ROWS, _ACC_ROWS,
                         _LANES).sum(axis=0)[None]

    if not any_mask:
        part_ref[...] += fold(contrib)
    else:
        li = ci * inner_tiles + ti  # linear tile index (unclamped)

        @pl.when(li < mask_from)
        def _():
            part_ref[...] += fold(contrib)

        @pl.when(li >= mask_from)
        def _():
            # Row-based comparison (no *LANES multiply): int32-safe below
            # ~2^31 rows (~2.7e11 elements).
            row = lax.broadcasted_iota(jnp.int32, contrib.shape, 0)
            lane = lax.broadcasted_iota(jnp.int32, contrib.shape, 1)
            grow = li * block_rows + row
            valid = (grow < full_rows) | ((grow == full_rows) & (lane < rem))
            part_ref[...] += fold(jnp.where(valid, contrib, 0.0))


def l1_log_loss(pred, target, alpha=0.5, block_rows=4096, n_chunks=None):
    assert pred.shape == target.shape
    assert block_rows % _ACC_ROWS == 0
    total = int(math.prod(pred.shape))
    assert total > 0
    alpha = float(alpha)
    inv_count = 1.0 / float(total)

    full_rows, rem = divmod(total, _LANES)
    rows2d = full_rows + (1 if rem else 0)

    p = pred.reshape(-1)    # reshape of contiguous data: free
    t = target.reshape(-1)
    if rem:
        # Lane-ragged tail (< 128 elements): pad up to one full row so the
        # lane-dense (rows2d, 128) view exists.  Cheap for the small path;
        # rare corner for large inputs (all tile/chunk alignment is handled
        # without padding below).
        pad = _LANES - rem
        p = jnp.pad(p, (0, pad))
        t = jnp.pad(t, (0, pad))
    p2 = p.reshape(rows2d, _LANES)
    t2 = t.reshape(rows2d, _LANES)

    if rows2d <= block_rows:
        # ---- single-block path: one grid step, no accumulator bookkeeping ----
        kernel = functools.partial(_l1log_single_kernel, alpha=alpha,
                                   full_rows=full_rows, rem=rem)
        partial = pl.pallas_call(
            kernel,
            out_shape=jax.ShapeDtypeStruct((1, _LANES), jnp.float32),
            grid_spec=pltpu.PrefetchScalarGridSpec(
                num_scalar_prefetch=0,
                grid=(1,),
                in_specs=[
                    pl.BlockSpec((rows2d, _LANES), lambda i: (0, 0)),
                    pl.BlockSpec((rows2d, _LANES), lambda i: (0, 0)),
                ],
                out_specs=pl.BlockSpec((1, _LANES), lambda i: (0, 0)),
            ),
            compiler_params=pltpu.CompilerParams(
                dimension_semantics=("arbitrary",)),
        )(p2, t2)
        return jnp.sum(partial) * inv_count

    # ---- tiled path: big streaming tiles + chip-aware parallel chunks ----
    total_tiles = _cdiv(rows2d, block_rows)
    nc = n_chunks if n_chunks is not None else _default_n_chunks()
    nc = max(1, min(int(nc), total_tiles))
    inner_tiles = _cdiv(total_tiles, nc)
    grid_tiles = nc * inner_tiles

    last_tile_partial = (rows2d % block_rows != 0) or (rem != 0)
    mask_from = (total_tiles - 1) if last_tile_partial else total_tiles
    any_mask = mask_from < grid_tiles

    kernel = functools.partial(
        _l1log_tiled_kernel, alpha=alpha, block_rows=block_rows,
        inner_tiles=inner_tiles, full_rows=full_rows, rem=rem,
        mask_from=mask_from, any_mask=any_mask)

    def in_map(ci, ti):
        # Clamp so grid steps past the real tile count re-read the last tile
        # (their contribution is masked to zero) -> no wrapper-side padding.
        return (jnp.minimum(ci * inner_tiles + ti, total_tiles - 1), 0)

    partials = pl.pallas_call(
        kernel,
        out_shape=jax.ShapeDtypeStruct((nc, _ACC_ROWS, _LANES), jnp.float32),
        grid_spec=pltpu.PrefetchScalarGridSpec(
            num_scalar_prefetch=0,
            grid=(nc, inner_tiles),
            in_specs=[
                pl.BlockSpec((block_rows, _LANES), in_map),
                pl.BlockSpec((block_rows, _LANES), in_map),
            ],
            out_specs=pl.BlockSpec((1, _ACC_ROWS, _LANES),
                                   lambda ci, ti: (ci, 0, 0)),
        ),
        compiler_params=pltpu.CompilerParams(
            dimension_semantics=("parallel", "arbitrary")),
    )(p2, t2)
    # Tiny final reduce of the lane-dense partial-sum slab in plain JAX.
    return jnp.sum(partials) * inv_count


if __name__ == "__main__":
    key = jax.random.PRNGKey(0)
    k1, k2 = jax.random.split(key)
    shape = (2, 4, 16, 16)  # NCHW, same convention as the PyTorch module
    pred = jax.random.normal(k1, shape, dtype=jnp.float32)
    target = jax.random.normal(k2, shape, dtype=jnp.float32)

    alpha = 0.5
    loss = l1_log_loss(pred, target, alpha=alpha)
    jax.block_until_ready(loss)

    ref = jnp.mean(jnp.log(jnp.abs(pred - target) + alpha))
    assert jnp.allclose(loss, ref, atol=1e-5, rtol=1e-5), (loss, ref)

    # Extra coverage of the other code paths, checked against plain JAX:
    #   ragged/masked single block, unmasked tiled, masked (partial last tile)
    #   tiled, and forced 2-chunk tiled with a clamped duplicate grid step.
    extra_cases = [
        ((3, 5, 7, 11), 1.5, None),      # lane-ragged  -> masked single block
        ((4, 8, 256, 256), 0.5, None),   # exact fit    -> unmasked tiled path
        ((4, 8, 256, 255), 0.25, None),  # partial tile -> masked tiled path
        ((5, 8, 256, 208), 0.75, 2),     # 5 tiles / 2 chunks -> clamped duplicate step
    ]
    for idx, (shp, a, nch) in enumerate(extra_cases):
        ka, kb = jax.random.split(jax.random.PRNGKey(idx + 1))
        pe = jax.random.normal(ka, shp, dtype=jnp.float32)
        te = jax.random.normal(kb, shp, dtype=jnp.float32)
        got = l1_log_loss(pe, te, alpha=a, n_chunks=nch)
        jax.block_until_ready(got)
        want = jnp.mean(jnp.log(jnp.abs(pe - te) + a))
        assert jnp.allclose(got, want, atol=1e-4, rtol=1e-4), (shp, got, want)

    print("KERNEL_OK")
</pallas_src>

<mosaic_0001>
module attributes {stable_mosaic.version = 11 : i64} {
  func.func @_l1log_single_kernel(%arg0: i32, %arg1: memref<16x128xf32, #tpu.memory_space<vmem>>, %arg2: memref<16x128xf32, #tpu.memory_space<vmem>>, %arg3: memref<1x128xf32, #tpu.memory_space<vmem>>) attributes {dimension_semantics = [#tpu.dimension_semantics<arbitrary>], iteration_bounds = array<i64: 1>, scalar_prefetch = 0 : i64, scratch_operands = 0 : i64, tpu.core_type = #tpu.core_type<tc>, window_params = [{pipeline_mode = #tpu.pipeline_mode<synchronous>, transform_indices = @transform_0, window_bounds = array<i64: 16, 128>}, {pipeline_mode = #tpu.pipeline_mode<synchronous>, transform_indices = @transform_1, window_bounds = array<i64: 16, 128>}, {pipeline_mode = #tpu.pipeline_mode<synchronous>, transform_indices = @transform_2, window_bounds = array<i64: 1, 128>}]} {
    %c0 = arith.constant 0 : index
    %c0_0 = arith.constant 0 : index
    %0 = vector.load %arg1[%c0, %c0_0] : memref<16x128xf32, #tpu.memory_space<vmem>>, vector<16x128xf32>
    %c0_1 = arith.constant 0 : index
    %c0_2 = arith.constant 0 : index
    %1 = vector.load %arg2[%c0_1, %c0_2] : memref<16x128xf32, #tpu.memory_space<vmem>>, vector<16x128xf32>
    %2 = arith.subf %0, %1 : vector<16x128xf32>
    %3 = math.absf %2 : vector<16x128xf32>
    %cst = arith.constant 5.000000e-01 : f32
    %4 = vector.broadcast %cst : f32 to vector<16x128xf32>
    %5 = arith.addf %3, %4 : vector<16x128xf32>
    %6 = math.log %5 : vector<16x128xf32>
    %cst_3 = arith.constant dense<0.000000e+00> : vector<128xf32>
    %7 = vector.multi_reduction <add>, %6, %cst_3 [0] : vector<16x128xf32> to vector<128xf32>
    %8 = vector.shape_cast %7 : vector<128xf32> to vector<1x128xf32>
    %c0_4 = arith.constant 0 : index
    %c0_5 = arith.constant 0 : index
    %9 = vector.load %arg3[%c0_4, %c0_5] : memref<1x128xf32, #tpu.memory_space<vmem>>, vector<1x128xf32>
    tpu.vector_store %arg3[%c0_4, %c0_5], %8 {strides = array<i32>} : memref<1x128xf32, #tpu.memory_space<vmem>>, vector<1x128xf32>,
    return
  }
  func.func @transform_0(%arg0: i32) -> (i32, i32) {
    %c0_i32 = arith.constant 0 : i32
    %c0_i32_0 = arith.constant 0 : i32
    %c0_i32_1 = arith.constant 0 : i32
    return %c0_i32, %c0_i32_0 : i32, i32
  }
  func.func @transform_1(%arg0: i32) -> (i32, i32) {
    %c0_i32 = arith.constant 0 : i32
    %c0_i32_0 = arith.constant 0 : i32
    %c0_i32_1 = arith.constant 0 : i32
    return %c0_i32, %c0_i32_0 : i32, i32
  }
  func.func @transform_2(%arg0: i32) -> (i32, i32) {
    %c0_i32 = arith.constant 0 : i32
    %c0_i32_0 = arith.constant 0 : i32
    %c0_i32_1 = arith.constant 0 : i32
    return %c0_i32, %c0_i32_0 : i32, i32
  }
}

</mosaic_0001>

<llo_original>
// kernel: tpu_custom_call.1
$region0: #{tpu_custom_call.1}
  #allocation0 [shape = 'u32[]', space=smem, size = 0x4, offset = 0x4, fixed_abs, tag = 'smem constant byte address 0x4 - core index']
  #allocation1 [shape = 'u32[144,128]{1,0:T(1,128)}', space=vmem, size = 0x12000, scoped, tag = 'internal scratch']
  %s0 = inlined_call_operand.hbm [shape: f32[16,128], index: 0, kind: input, shape index: {}]
  %s1 = inlined_call_operand.hbm [shape: f32[16,128], index: 1, kind: input, shape index: {}]
  %s2 = inlined_call_operand.hbm [shape: f32[1,128], index: 2, kind: output, shape index: {}]
  %s3 = sld [smem:[#allocation0]]
  $region26: #{tpu_custom_call.1} parent=0
    _
  %s5 = ssub.s32 1, %s3
  %s6 = scalar_select 0, %s5, %s3
  $region1: #{tpu_custom_call.1} parent=0
    #allocation2 [shape = 'u8[8192]{0}', space=vmem, size = 0x2000, scoped, tag = 'input window, operand 0, single buffered']
    #allocation3 [shape = 's32[1]{0}', space=sflag, size = 0x4, scoped, tag = 'scoped memory for tpu_custom_call.1']
    #allocation4 [shape = 's32[1]{0}', space=sflag, size = 0x4, scoped, tag = 'scoped memory for tpu_custom_call.1']
    #allocation5 [shape = 'u8[8192]{0}', space=vmem, size = 0x2000, scoped, tag = 'input window, operand 1, single buffered']
    #allocation6 [shape = 's32[1]{0}', space=sflag, size = 0x4, scoped, tag = 'scoped memory for tpu_custom_call.1']
    #allocation7 [shape = 'u8[512]{0}', space=vmem, size = 0x400, scoped, tag = 'output window, operand 0, single buffered']
    %7 = vsyncpa [#allocation3], 0
    %8 = vsyncpa [#allocation6], 0
    %9 = vsyncpa [#allocation4], 0
    // Predicated region
    $region2: #{tpu_custom_call.1} parent=1 // pred_check
      _
    $region3: #{tpu_custom_call.1} parent=1 // pred_check_branch
      %11 = sbr.rel (0) target = $region5
    $region4: #{tpu_custom_call.1} parent=1 // pred_region
      %s13 = ssub.s32 256, 256
      %14 = vsyncadd [#allocation3], %s13
      %s15 = sshll.u32 [#allocation2], 4
      %s16 = int_to_ptr.vmem [resolvable:$true] %s15
      %21 = dma.hbm_to_vmem [thread:$0]  %s0, 256, %s16, [#allocation3], 128, 128, 8
    $region5: #{tpu_custom_call.1} parent=1 // pred_fallthru
      _
    // Predicated region
    $region6: #{tpu_custom_call.1} parent=1 // pred_check
      _
    $region7: #{tpu_custom_call.1} parent=1 // pred_check_branch
      %23 = sbr.rel (0) target = $region9
    $region8: #{tpu_custom_call.1} parent=1 // pred_region
      %s25 = ssub.s32 256, 256
      %26 = vsyncadd [#allocation6], %s25
      %s27 = sshll.u32 [#allocation5], 4
      %s28 = int_to_ptr.vmem [resolvable:$true] %s27
      %33 = dma.hbm_to_vmem [thread:$0]  %s1, 256, %s28, [#allocation6], 128, 128, 8
    $region9: #{tpu_custom_call.1} parent=1 // pred_fallthru
      _
    // Predicated region
    $region10: #{tpu_custom_call.1} parent=1 // pred_check
      _
    $region11: #{tpu_custom_call.1} parent=1 // pred_check_branch
      %35 = sbr.rel (0) target = $region13
    $region12: #{tpu_custom_call.1} parent=1 // pred_region
      %36 = dma.done [#allocation3], 256
    $region13: #{tpu_custom_call.1} parent=1 // pred_fallthru
      _
    // Predicated region
    $region14: #{tpu_custom_call.1} parent=1 // pred_check
      _
    $region15: #{tpu_custom_call.1} parent=1 // pred_check_branch
      %38 = sbr.rel (0) target = $region17
    $region16: #{tpu_custom_call.1} parent=1 // pred_region
      %39 = dma.done [#allocation6], 256
    $region17: #{tpu_custom_call.1} parent=1 // pred_fallthru
      _
    %v40 = vld [vmem:[#allocation2] sm:$0xff]
    %v41 = vld [vmem:[#allocation2 + $0x8] sm:$0xff]
    %v42 = vld [vmem:[#allocation5] sm:$0xff]
    %v43 = vld [vmem:[#allocation5 + $0x8] sm:$0xff]
    %v44 = vsub.f32 %v40, %v42
    %v45 = vsub.f32 %v41, %v43
    %v46 = vand.u32 2147483647, %v44
    %v47 = vand.u32 2147483647, %v45
    %v48 = vadd.f32 %v46, 0.5
    %v49 = vadd.f32 %v47, 0.5
    %v50 = vlog2.pop %v48
    %v51 = vmul.f32 %v50, 0.6931472
    %v52 = vlog2.pop %v49
    %v53 = vmul.f32 %v52, 0.6931472
    %v54 = vadd.f32 %v51, %v53
    %v55 = vrot.slane %v54, 4
    %v56 = vadd.f32 %v54, %v55
    %v57 = vrot.slane %v56, 2
    %v58 = vadd.f32 %v56, %v57
    %v59 = vrot.slane %v58, 1
    %v60 = vadd.f32 %v58, %v59
    %61 = vst [vmem:[#allocation7] sm:$0x1] %v60
    // Predicated region
    $region18: #{tpu_custom_call.1} parent=1 // pred_check
      _
    $region19: #{tpu_custom_call.1} parent=1 // pred_check_branch
      %63 = sbr.rel (0) target = $region21
    $region20: #{tpu_custom_call.1} parent=1 // pred_region
      %s65 = ssub.s32 16, 16
      %66 = vsyncadd [#allocation4], %s65
      %s68 = sshll.u32 [#allocation7], 4
      %s69 = int_to_ptr.vmem [resolvable:$true] %s68
      %71 = dma.vmem_to_hbm [thread:$0]  %s69, 16, %s2, [#allocation4]
    $region21: #{tpu_custom_call.1} parent=1 // pred_fallthru
      _
    // Predicated region
    $region22: #{tpu_custom_call.1} parent=1 // pred_check
      _
    $region23: #{tpu_custom_call.1} parent=1 // pred_check_branch
      %73 = sbr.rel (0) target = $region25
    $region24: #{tpu_custom_call.1} parent=1 // pred_region
      %74 = dma.done [#allocation4], 16
    $region25: #{tpu_custom_call.1} parent=1 // pred_fallthru
      _
    %75 = vsyncpa [#allocation3], 1
    %76 = vsyncpa [#allocation6], 1
    %77 = vsyncpa [#allocation4], 1

</llo_original>
